<compile_context>
chip_gen: v6e
topology: v6e:2x2x1
jax: 0.10.0
libtpu: 0.0.40
codegen_flags: <defaults>
</compile_context>

<pallas_src>
from functools import partial

import jax
import jax.numpy as jnp
from jax.experimental import pallas as pl
from jax.experimental.pallas import tpu as pltpu


def _elu(x, alpha):
    return jnp.where(x > 0, x, alpha * (jnp.exp(x) - 1.0))


def _fused_resblock_kernel(xf_ref, w1_ref, b1_ref, w2_ref, b2_ref, o_ref,
                           *, k1, d1, k2, d2, tt, l2, r2, halo_left, alpha):
    # xf_ref: (Cin, W)  frame = x tile + combined halo, time on lanes
    # w1_ref: (Cmid, k1*Cin)   w2_ref: (Cout, k2*Cmid)   biases: (C, 1)
    # o_ref:  (Cout, tt)
    wy = tt + l2 + r2                       # conv1 output width (tile + conv2 halo)
    xf = xf_ref[...].astype(jnp.float32)

    # ---- conv1: ELU(x) -> (Cmid, wy); all taps in one MXU contraction ----
    a1 = _elu(xf, alpha)
    z1 = jnp.concatenate([a1[:, j * d1: j * d1 + wy] for j in range(k1)], axis=0)
    y1 = jnp.dot(w1_ref[...], z1, preferred_element_type=jnp.float32) + b1_ref[...]

    # ---- in-kernel reflect padding of y1 at the sequence edges (k2 > 1) ----
    if l2 > 0:
        t = pl.program_id(1)
        refl = jnp.concatenate(
            [y1[:, 2 * l2 - m: 2 * l2 - m + 1] for m in range(l2)], axis=-1)
        left = jnp.where(t == 0, refl, y1[:, :l2])
        y1 = jnp.concatenate([left, y1[:, l2:]], axis=-1)
    if r2 > 0:
        t = pl.program_id(1)
        nt = pl.num_programs(1)
        refl = jnp.concatenate(
            [y1[:, tt + l2 - 2 - m: tt + l2 - 1 - m] for m in range(r2)], axis=-1)
        right = jnp.where(t == nt - 1, refl, y1[:, wy - r2:])
        y1 = jnp.concatenate([y1[:, : wy - r2], right], axis=-1)

    # ---- conv2: ELU(y1) -> (Cout, tt), plus identity skip ----
    a2 = _elu(y1, alpha)
    z2 = jnp.concatenate([a2[:, j * d2: j * d2 + tt] for j in range(k2)], axis=0)
    out = jnp.dot(w2_ref[...], z2, preferred_element_type=jnp.float32) + b2_ref[...]
    out = out + xf[:, halo_left: halo_left + tt]   # true_skip=False -> Identity
    o_ref[...] = out.astype(o_ref.dtype)


def _pick_time_tile(T, halo):
    # Largest lane-aligned tile that divides T and covers the halo.  Tiles are
    # kept modest so double-buffered frames + outputs fit scoped VMEM on every
    # generation (v7x has half the VMEM of v5e/v6e).
    for tt in (1024, 512, 256, 128):
        if T % tt == 0 and tt >= halo + 2:
            return tt
    return T                      # small / odd T: one tile per batch row


def seanet_resnet_block(x, params, *, kernel_sizes, dilations, alpha=1.0,
                        time_tile=None):
    """x: (B, C, T) float32 (PyTorch NCT layout). Returns (B, C, T)."""
    B, C, T = x.shape
    k1, k2 = kernel_sizes
    d1, d2 = dilations

    w1, b1 = params["w1"], params["b1"]    # (Cmid, C, k1), (Cmid,)
    w2, b2 = params["w2"], params["b2"]    # (C, Cmid, k2), (C,)
    Cmid = w1.shape[0]
    assert w2.shape[0] == C                # identity skip needs Cout == Cin

    # SConv1d (stride=1): padding_total = (k-1)*d, extra = 0, non-causal split.
    pt1 = (k1 - 1) * d1; r1 = pt1 // 2; l1 = pt1 - r1
    pt2 = (k2 - 1) * d2; r2 = pt2 // 2; l2 = pt2 - r2
    L, R = l1 + l2, r1 + r2

    TT = time_tile if time_tile is not None else _pick_time_tile(T, L + R)
    assert T % TT == 0, "ragged last time tile not supported"  # TODO(synk)
    if pt2:
        assert TT >= pt2 + 2
    nT = T // TT
    W = TT + L + R                         # per-tile input frame width

    # Reflect-pad x ONCE by the combined halo.  The outer l2/r2 region only
    # feeds y1 positions that get overwritten by the in-kernel y1 reflection.
    x_p = jnp.pad(x, ((0, 0), (0, 0), (L, R)), mode="reflect")
    if nT == 1:
        xf = x_p[:, None]                                   # (B, 1, C, W)
    else:
        # TODO(synk): for very long T replace this frame gather with in-kernel
        # halo DMA (memory_space=pl.ANY + make_async_copy) to avoid the copy.
        idx = (jnp.arange(nT) * TT)[:, None] + jnp.arange(W)[None, :]
        xf = jnp.transpose(x_p[:, :, idx], (0, 2, 1, 3))    # (B, nT, C, W)

    # Collapse taps into the contraction dim: (Cout, K*Cin), col = j*Cin + i.
    w1f = jnp.transpose(w1, (0, 2, 1)).reshape(Cmid, k1 * C).astype(jnp.float32)
    w2f = jnp.transpose(w2, (0, 2, 1)).reshape(C, k2 * Cmid).astype(jnp.float32)
    b1c = b1.reshape(Cmid, 1).astype(jnp.float32)
    b2c = b2.reshape(C, 1).astype(jnp.float32)

    kern = partial(_fused_resblock_kernel, k1=k1, d1=d1, k2=k2, d2=d2,
                   tt=TT, l2=l2, r2=r2, halo_left=L, alpha=alpha)
    return pl.pallas_call(
        kern,
        out_shape=jax.ShapeDtypeStruct((B, C, T), x.dtype),
        grid=(B, nT),
        in_specs=[
            pl.BlockSpec((None, None, C, W), lambda b, t: (b, t, 0, 0)),
            pl.BlockSpec((Cmid, k1 * C), lambda b, t: (0, 0)),
            pl.BlockSpec((Cmid, 1), lambda b, t: (0, 0)),
            pl.BlockSpec((C, k2 * Cmid), lambda b, t: (0, 0)),
            pl.BlockSpec((C, 1), lambda b, t: (0, 0)),
        ],
        out_specs=pl.BlockSpec((None, C, TT), lambda b, t: (b, 0, t)),
        compiler_params=pltpu.CompilerParams(
            dimension_semantics=("parallel", "parallel"),
            vmem_limit_bytes=32 * 1024 * 1024),
    )(xf, w1f, b1c, w2f, b2c)


# ---------------------------------------------------------------------------
# Pure-JAX reference (same math, no Pallas) for a correctness check.
# ---------------------------------------------------------------------------
def _ref_conv_nct(a_pad, w, b, dil):
    # a_pad: (B, Cin, Tp); w: (Cout, Cin, K) PyTorch layout; b: (Cout,)
    K = w.shape[2]
    T = a_pad.shape[2] - (K - 1) * dil
    out = sum(jnp.einsum("oi,bit->bot", w[:, :, j],
                         a_pad[:, :, j * dil: j * dil + T]) for j in range(K))
    return out + b[None, :, None]


def ref_forward(x, params, *, kernel_sizes, dilations, alpha=1.0):
    k1, k2 = kernel_sizes
    d1, d2 = dilations
    pt1 = (k1 - 1) * d1; r1 = pt1 // 2; l1 = pt1 - r1
    pt2 = (k2 - 1) * d2; r2 = pt2 // 2; l2 = pt2 - r2
    a1 = _elu(jnp.pad(x, ((0, 0), (0, 0), (l1, r1)), mode="reflect"), alpha)
    y1 = _ref_conv_nct(a1, params["w1"], params["b1"], d1)
    a2 = _elu(jnp.pad(y1, ((0, 0), (0, 0), (l2, r2)), mode="reflect"), alpha)
    y2 = _ref_conv_nct(a2, params["w2"], params["b2"], d2)
    return y2 + x


if __name__ == "__main__":
    # Module config: dim=8, compress=2 -> mid_dim=4, kernel_sizes=[3,1],
    # dilations=[2,1], ELU(alpha=1.0), norm='none', causal=False,
    # pad_mode='reflect', true_skip=False.
    B, dim, T = 2, 8, 16
    compress = 2
    mid_dim = dim // compress
    kernel_sizes = (3, 1)
    dilations = (2, 1)
    alpha = 1.0

    key = jax.random.PRNGKey(0)
    kx, kw1, kb1, kw2, kb2 = jax.random.split(key, 5)

    x = jax.random.normal(kx, (B, dim, T), jnp.float32)
    params = {
        # PyTorch Conv1d weight layout (C_out, C_in, K).
        "w1": 0.3 * jax.random.normal(kw1, (mid_dim, dim, kernel_sizes[0]), jnp.float32),
        "b1": 0.1 * jax.random.normal(kb1, (mid_dim,), jnp.float32),
        "w2": 0.3 * jax.random.normal(kw2, (dim, mid_dim, kernel_sizes[1]), jnp.float32),
        "b2": 0.1 * jax.random.normal(kb2, (dim,), jnp.float32),
    }

    fwd = jax.jit(partial(seanet_resnet_block, kernel_sizes=kernel_sizes,
                          dilations=dilations, alpha=alpha))
    out = jax.block_until_ready(fwd(x, params))

    ref = ref_forward(x, params, kernel_sizes=kernel_sizes,
                      dilations=dilations, alpha=alpha)
    assert out.shape == (B, dim, T)
    assert jnp.allclose(out, ref, atol=1e-4, rtol=1e-4), \
        float(jnp.max(jnp.abs(out - ref)))

    print("KERNEL_OK")
</pallas_src>

<mosaic_0001>
module attributes {stable_mosaic.version = 11 : i64} {
  func.func @_fused_resblock_kernel(%arg0: i32, %arg1: i32, %arg2: memref<1x1x8x20xf32, #tpu.memory_space<vmem>>, %arg3: memref<4x24xf32, #tpu.memory_space<vmem>>, %arg4: memref<4x1xf32, #tpu.memory_space<vmem>>, %arg5: memref<8x4xf32, #tpu.memory_space<vmem>>, %arg6: memref<8x1xf32, #tpu.memory_space<vmem>>, %arg7: memref<1x8x16xf32, #tpu.memory_space<vmem>>) attributes {dimension_semantics = [#tpu.dimension_semantics<parallel>, #tpu.dimension_semantics<parallel>], iteration_bounds = array<i64: 2, 1>, scalar_prefetch = 0 : i64, scratch_operands = 0 : i64, tpu.core_type = #tpu.core_type<tc>, window_params = [{transform_indices = @transform_0, window_bounds = array<i64: 1, 1, 8, 20>}, {pipeline_mode = #tpu.pipeline_mode<synchronous>, transform_indices = @transform_1, window_bounds = array<i64: 4, 24>}, {pipeline_mode = #tpu.pipeline_mode<synchronous>, transform_indices = @transform_2, window_bounds = array<i64: 4, 1>}, {pipeline_mode = #tpu.pipeline_mode<synchronous>, transform_indices = @transform_3, window_bounds = array<i64: 8, 4>}, {pipeline_mode = #tpu.pipeline_mode<synchronous>, transform_indices = @transform_4, window_bounds = array<i64: 8, 1>}, {transform_indices = @transform_5, window_bounds = array<i64: 1, 8, 16>}]} {
    %c0 = arith.constant 0 : index
    %c0_0 = arith.constant 0 : index
    %c0_1 = arith.constant 0 : index
    %c0_2 = arith.constant 0 : index
    %0 = vector.load %arg2[%c0, %c0_0, %c0_1, %c0_2] : memref<1x1x8x20xf32, #tpu.memory_space<vmem>>, vector<1x1x8x20xf32>
    %1 = vector.shape_cast %0 : vector<1x1x8x20xf32> to vector<8x20xf32>
    %cst = arith.constant 0.000000e+00 : f32
    %2 = vector.broadcast %cst : f32 to vector<8x20xf32>
    %3 = arith.cmpf ogt, %1, %2 : vector<8x20xf32>
    %4 = math.exp %1 : vector<8x20xf32>
    %cst_3 = arith.constant 1.000000e+00 : f32
    %5 = vector.broadcast %cst_3 : f32 to vector<8x20xf32>
    %6 = arith.subf %4, %5 : vector<8x20xf32>
    %cst_4 = arith.constant 1.000000e+00 : f32
    %7 = vector.broadcast %cst_4 : f32 to vector<8x20xf32>
    %8 = arith.mulf %7, %6 : vector<8x20xf32>
    %9 = arith.select %3, %1, %8 : vector<8x20xi1>, vector<8x20xf32>
    %10 = vector.extract_strided_slice %9 {offsets = [0, 0], sizes = [8, 16], strides = [1, 1]} : vector<8x20xf32> to vector<8x16xf32>
    %11 = vector.extract_strided_slice %9 {offsets = [0, 2], sizes = [8, 16], strides = [1, 1]} : vector<8x20xf32> to vector<8x16xf32>
    %12 = vector.extract_strided_slice %9 {offsets = [0, 4], sizes = [8, 16], strides = [1, 1]} : vector<8x20xf32> to vector<8x16xf32>
    %13 = tpu.concatenate %10, %11, %12 in 0 : vector<8x16xf32>, vector<8x16xf32>, vector<8x16xf32> -> vector<24x16xf32>
    %c0_5 = arith.constant 0 : index
    %c0_6 = arith.constant 0 : index
    %14 = vector.load %arg3[%c0_5, %c0_6] : memref<4x24xf32, #tpu.memory_space<vmem>>, vector<4x24xf32>
    %cst_7 = arith.constant dense<0.000000e+00> : vector<4x16xf32>
    %15 = tpu.matmul %14, %13, %cst_7 {dimension_numbers = #tpu.dot_dimension_numbers<[1], [0], [0], [1], [0, 0, 1, 1], [], []>} : vector<4x24xf32>, vector<24x16xf32>, vector<4x16xf32> -> vector<4x16xf32>
    %c0_8 = arith.constant 0 : index
    %c0_9 = arith.constant 0 : index
    %16 = vector.load %arg4[%c0_8, %c0_9] : memref<4x1xf32, #tpu.memory_space<vmem>>, vector<4x1xf32>
    %17 = vector.broadcast %16 : vector<4x1xf32> to vector<4x16xf32>
    %18 = arith.addf %15, %17 : vector<4x16xf32>
    %cst_10 = arith.constant 0.000000e+00 : f32
    %19 = vector.broadcast %cst_10 : f32 to vector<4x16xf32>
    %20 = arith.cmpf ogt, %18, %19 : vector<4x16xf32>
    %21 = math.exp %18 : vector<4x16xf32>
    %cst_11 = arith.constant 1.000000e+00 : f32
    %22 = vector.broadcast %cst_11 : f32 to vector<4x16xf32>
    %23 = arith.subf %21, %22 : vector<4x16xf32>
    %cst_12 = arith.constant 1.000000e+00 : f32
    %24 = vector.broadcast %cst_12 : f32 to vector<4x16xf32>
    %25 = arith.mulf %24, %23 : vector<4x16xf32>
    %26 = arith.select %20, %18, %25 : vector<4x16xi1>, vector<4x16xf32>
    %c0_13 = arith.constant 0 : index
    %c0_14 = arith.constant 0 : index
    %27 = vector.load %arg5[%c0_13, %c0_14] : memref<8x4xf32, #tpu.memory_space<vmem>>, vector<8x4xf32>
    %cst_15 = arith.constant dense<0.000000e+00> : vector<8x16xf32>
    %28 = tpu.matmul %27, %26, %cst_15 {dimension_numbers = #tpu.dot_dimension_numbers<[1], [0], [0], [1], [0, 0, 1, 1], [], []>} : vector<8x4xf32>, vector<4x16xf32>, vector<8x16xf32> -> vector<8x16xf32>
    %c0_16 = arith.constant 0 : index
    %c0_17 = arith.constant 0 : index
    %29 = vector.load %arg6[%c0_16, %c0_17] : memref<8x1xf32, #tpu.memory_space<vmem>>, vector<8x1xf32>
    %30 = vector.broadcast %29 : vector<8x1xf32> to vector<8x16xf32>
    %31 = arith.addf %28, %30 : vector<8x16xf32>
    %32 = vector.extract_strided_slice %1 {offsets = [0, 2], sizes = [8, 16], strides = [1, 1]} : vector<8x20xf32> to vector<8x16xf32>
    %33 = arith.addf %31, %32 : vector<8x16xf32>
    %c0_18 = arith.constant 0 : index
    %c0_19 = arith.constant 0 : index
    %c0_20 = arith.constant 0 : index
    %34 = vector.load %arg7[%c0_18, %c0_19, %c0_20] : memref<1x8x16xf32, #tpu.memory_space<vmem>>, vector<1x8x16xf32>
    %35 = vector.shape_cast %34 : vector<1x8x16xf32> to vector<8x16xf32>
    %36 = vector.shape_cast %33 : vector<8x16xf32> to vector<1x8x16xf32>
    tpu.vector_store %arg7[%c0_18, %c0_19, %c0_20], %36 {strides = array<i32>} : memref<1x8x16xf32, #tpu.memory_space<vmem>>, vector<1x8x16xf32>,
    return
  }
  func.func @transform_0(%arg0: i32, %arg1: i32) -> (i32, i32, i32, i32) {
    %c0_i32 = arith.constant 0 : i32
    %c0_i32_0 = arith.constant 0 : i32
    %c0_i32_1 = arith.constant 0 : i32
    return %arg0, %arg1, %c0_i32, %c0_i32_0 : i32, i32, i32, i32
  }
  func.func @transform_1(%arg0: i32, %arg1: i32) -> (i32, i32) {
    %c0_i32 = arith.constant 0 : i32
    %c0_i32_0 = arith.constant 0 : i32
    %c0_i32_1 = arith.constant 0 : i32
    return %c0_i32, %c0_i32_0 : i32, i32
  }
  func.func @transform_2(%arg0: i32, %arg1: i32) -> (i32, i32) {
    %c0_i32 = arith.constant 0 : i32
    %c0_i32_0 = arith.constant 0 : i32
    %c0_i32_1 = arith.constant 0 : i32
    return %c0_i32, %c0_i32_0 : i32, i32
  }
  func.func @transform_3(%arg0: i32, %arg1: i32) -> (i32, i32) {
    %c0_i32 = arith.constant 0 : i32
    %c0_i32_0 = arith.constant 0 : i32
    %c0_i32_1 = arith.constant 0 : i32
    return %c0_i32, %c0_i32_0 : i32, i32
  }
  func.func @transform_4(%arg0: i32, %arg1: i32) -> (i32, i32) {
    %c0_i32 = arith.constant 0 : i32
    %c0_i32_0 = arith.constant 0 : i32
    %c0_i32_1 = arith.constant 0 : i32
    return %c0_i32, %c0_i32_0 : i32, i32
  }
  func.func @transform_5(%arg0: i32, %arg1: i32) -> (i32, i32, i32) {
    %c0_i32 = arith.constant 0 : i32
    %c0_i32_0 = arith.constant 0 : i32
    return %arg0, %c0_i32, %arg1 : i32, i32, i32
  }
}

</mosaic_0001>

<llo_original>
// kernel: seanet_resnet_block.1
$region0: #{seanet_resnet_block.1}
  #allocation0 [shape = 'u32[]', space=smem, size = 0x4, offset = 0x4, fixed_abs, tag = 'smem constant byte address 0x4 - core index']
  #allocation1 [shape = 'u32[144,128]{1,0:T(1,128)}', space=vmem, size = 0x12000, scoped, tag = 'internal scratch']
  %s0 = inlined_call_operand.vmem [shape: f32[2,1,8,20], index: 0, kind: input, shape index: {}]
  %s1 = inlined_call_operand.vmem [shape: f32[4,24], index: 1, kind: input, shape index: {}]
  %s2 = inlined_call_operand.vmem [shape: f32[4,1], index: 2, kind: input, shape index: {}]
  %s3 = inlined_call_operand.vmem [shape: f32[8,4], index: 3, kind: input, shape index: {}]
  %s4 = inlined_call_operand.vmem [shape: f32[8,1], index: 4, kind: input, shape index: {}]
  %s5 = inlined_call_operand.hbm [shape: f32[2,8,16], index: 5, kind: output, shape index: {}]
  %s6 = sld [smem:[#allocation0]]
  $region53: #{seanet_resnet_block.1} parent=0
    _
  %s8 = ssub.s32 1, %s6
  %s9 = scalar_select 0, %s8, %s6
  $region1: #{seanet_resnet_block.1} parent=0
    #allocation2 [shape = 'u8[8192]{0}', space=vmem, size = 0x2000, scoped, tag = 'output window, operand 0']
    #allocation3 [shape = 's32[2]{0}', space=sflag, size = 0x8, scoped, tag = 'scoped memory for seanet_resnet_block.1']
    %10 = vsyncpa [#allocation3], 0
    %s11 = scalar_lea.sflag [#allocation3], 1
    %12 = vsyncpa %s11, 0
    loop: start=0, step=1, limit=4
    $region2: #{seanet_resnet_block.1} parent=1 // loop_pre_header
      _
    $region3: #{seanet_resnet_block.1} parent=1 // loop_header
      %s14 = sphi 0, %s18
      %p15 = scmp.ge.s32.totalorder %s14, 4
      %s21 = sphi 0, %s33
      %s22 = sphi 0, %s29
      %s23 = sphi 0, %s21
      %s24 = sphi 0, %s22
      %s25 = sphi 0, %s23
      %s26 = sphi 0, %s24
      %s38 = sphi 0, %s40
      %s41 = sphi 0, %s38
      %s42 = sphi 0, %s41
      %s58 = sphi 0, %s42
      %s62 = sphi 0, %s62
      %s64 = sphi 0, %s62
      %s65 = sphi 0, %s64
      %s79 = sphi 0, %s65
      %s83 = sphi 0, %s83
      %s85 = sphi 0, %s83
      %s86 = sphi 0, %s85
      %s100 = sphi 0, %s86
      %s104 = sphi 0, %s104
      %s106 = sphi 0, %s104
      %s107 = sphi 0, %s106
      %s121 = sphi 0, %s107
      %s125 = sphi 0, %s125
      %s127 = sphi 0, %s125
      %s128 = sphi 0, %s127
      %s142 = sphi 0, %s128
      %s150 = sphi 0, %s152
      %s153 = sphi 0, %s150
      %s154 = sphi 0, %s153
      %s170 = sphi 0, %s154
    $region4: #{seanet_resnet_block.1} parent=1 // loop_header_branch
      %17 = sbr.rel (%p15) target = $region8
    $region5: #{seanet_resnet_block.1} parent=1 // loop_body
      %s19 = ssub.s32 %s14, 1
      %s20 = ssub.s32 %s14, 2
      %s27 = sadd.s32 1, %s22
      %p28 = scmp.ge.s32.totalorder %s27, 1
      %s29 = scalar_select %p28, 0, %s27
      %s30 = sadd.s32 1, %s21
      %s31 = scalar_select %p28, %s30, %s21
      %p32 = scmp.ge.s32.totalorder %s31, 2
      %s33 = scalar_select %p32, 0, %s31
      %s34 = ssub.s32 %s21, %s33
      %s35 = ssub.s32 %s22, %s29
      %s36 = sor.u32 %s34, %s35
      %p37 = scmp.eq.s32.totalorder %s36, 0
      %s39 = sadd.s32 %s38, 1
      %s40 = scalar_select %p37, %s38, %s39
      %p43 = pneg %p37
      %p44 = scmp.eq.s32.totalorder %s14, 1
      %p45 = por %p43, %p44
      %p46 = scmp.ne.s32.totalorder %s38, %s41
      %p47 = scmp.eq.s32.totalorder %s14, 0
      %p48 = por %p46, %p47
      %p49 = scmp.ne.s32.totalorder %s38, %s41
      %p50 = scmp.eq.s32.totalorder %s19, 1
      %p51 = por %p49, %p50
      %p52 = scmp.ne.s32.totalorder %s41, %s42
      %p53 = scmp.eq.s32.totalorder %s19, 0
      %p54 = por %p52, %p53
      %p55 = scmp.ne.s32.totalorder %s41, %s42
      %p56 = scmp.eq.s32.totalorder %s20, 1
      %p57 = por %p55, %p56
      %p59 = scmp.ne.s32.totalorder %s42, %s58
      %p60 = scmp.eq.s32.totalorder %s20, 0
      %p61 = por %p59, %p60
      %s63 = sadd.s32 %s62, 1
      %p66 = scmp.eq.s32.totalorder %s14, 1
      %p67 = scmp.ne.s32.totalorder %s62, %s64
      %p68 = scmp.eq.s32.totalorder %s14, 0
      %p69 = por %p67, %p68
      %p70 = scmp.ne.s32.totalorder %s62, %s64
      %p71 = scmp.eq.s32.totalorder %s19, 1
      %p72 = por %p70, %p71
      %p73 = scmp.ne.s32.totalorder %s64, %s65
      %p74 = scmp.eq.s32.totalorder %s19, 0
      %p75 = por %p73, %p74
      %p76 = scmp.ne.s32.totalorder %s64, %s65
      %p77 = scmp.eq.s32.totalorder %s20, 1
      %p78 = por %p76, %p77
      %p80 = scmp.ne.s32.totalorder %s65, %s79
      %p81 = scmp.eq.s32.totalorder %s20, 0
      %p82 = por %p80, %p81
      %s84 = sadd.s32 %s83, 1
      %p87 = scmp.eq.s32.totalorder %s14, 1
      %p88 = scmp.ne.s32.totalorder %s83, %s85
      %p89 = scmp.eq.s32.totalorder %s14, 0
      %p90 = por %p88, %p89
      %p91 = scmp.ne.s32.totalorder %s83, %s85
      %p92 = scmp.eq.s32.totalorder %s19, 1
      %p93 = por %p91, %p92
      %p94 = scmp.ne.s32.totalorder %s85, %s86
      %p95 = scmp.eq.s32.totalorder %s19, 0
      %p96 = por %p94, %p95
      %p97 = scmp.ne.s32.totalorder %s85, %s86
      %p98 = scmp.eq.s32.totalorder %s20, 1
      %p99 = por %p97, %p98
      %p101 = scmp.ne.s32.totalorder %s86, %s100
      %p102 = scmp.eq.s32.totalorder %s20, 0
      %p103 = por %p101, %p102
      %s105 = sadd.s32 %s104, 1
      %p108 = scmp.eq.s32.totalorder %s14, 1
      %p109 = scmp.ne.s32.totalorder %s104, %s106
      %p110 = scmp.eq.s32.totalorder %s14, 0
      %p111 = por %p109, %p110
      %p112 = scmp.ne.s32.totalorder %s104, %s106
      %p113 = scmp.eq.s32.totalorder %s19, 1
      %p114 = por %p112, %p113
      %p115 = scmp.ne.s32.totalorder %s106, %s107
      %p116 = scmp.eq.s32.totalorder %s19, 0
      %p117 = por %p115, %p116
      %p118 = scmp.ne.s32.totalorder %s106, %s107
      %p119 = scmp.eq.s32.totalorder %s20, 1
      %p120 = por %p118, %p119
      %p122 = scmp.ne.s32.totalorder %s107, %s121
      %p123 = scmp.eq.s32.totalorder %s20, 0
      %p124 = por %p122, %p123
      %s126 = sadd.s32 %s125, 1
      %p129 = scmp.eq.s32.totalorder %s14, 1
      %p130 = scmp.ne.s32.totalorder %s125, %s127
      %p131 = scmp.eq.s32.totalorder %s14, 0
      %p132 = por %p130, %p131
      %p133 = scmp.ne.s32.totalorder %s125, %s127
      %p134 = scmp.eq.s32.totalorder %s19, 1
      %p135 = por %p133, %p134
      %p136 = scmp.ne.s32.totalorder %s127, %s128
      %p137 = scmp.eq.s32.totalorder %s19, 0
      %p138 = por %p136, %p137
      %p139 = scmp.ne.s32.totalorder %s127, %s128
      %p140 = scmp.eq.s32.totalorder %s20, 1
      %p141 = por %p139, %p140
      %p143 = scmp.ne.s32.totalorder %s128, %s142
      %p144 = scmp.eq.s32.totalorder %s20, 0
      %p145 = por %p143, %p144
      %s146 = ssub.s32 %s21, %s33
      %s147 = ssub.s32 %s22, %s29
      %s148 = sor.u32 %s146, %s147
      %p149 = scmp.eq.s32.totalorder %s148, 0
      %s151 = sadd.s32 %s150, 1
      %s152 = scalar_select %p149, %s150, %s151
      %p155 = pneg %p149
      %p156 = scmp.eq.s32.totalorder %s14, 1
      %p157 = por %p155, %p156
      %p158 = scmp.ne.s32.totalorder %s150, %s153
      %p159 = scmp.eq.s32.totalorder %s14, 0
      %p160 = por %p158, %p159
      %p161 = scmp.ne.s32.totalorder %s150, %s153
      %p162 = scmp.eq.s32.totalorder %s19, 1
      %p163 = por %p161, %p162
      %p164 = scmp.ne.s32.totalorder %s153, %s154
      %p165 = scmp.eq.s32.totalorder %s19, 0
      %p166 = por %p164, %p165
      %p167 = scmp.ne.s32.totalorder %s153, %s154
      %p168 = scmp.eq.s32.totalorder %s20, 1
      %p169 = por %p167, %p168
      %p171 = scmp.ne.s32.totalorder %s154, %s170
      %p172 = scmp.eq.s32.totalorder %s20, 0
      %p173 = por %p171, %p172
      %p174 = scmp.le.s32.totalorder 1, %s14
      %p175 = scmp.lt.s32.totalorder %s14, 3
      %p176 = pnand %p174, %p175
      %p177 = pneg %p176
      // Predicated region
      $region9: #{seanet_resnet_block.1} parent=5 // pred_check
        _
      $region10: #{seanet_resnet_block.1} parent=5 // pred_check_branch
        %179 = sbr.rel (%p176) target = $region12
      $region11: #{seanet_resnet_block.1} parent=5 // pred_region
        %s180 = ssub.s32 %s14, 1
        // Predicated region
        $region13: #{seanet_resnet_block.1} parent=11 // pred_check
          %p181 = pneg %p75
        $region14: #{seanet_resnet_block.1} parent=11 // pred_check_branch
          %183 = sbr.rel (%p181) target = $region16
        $region15: #{seanet_resnet_block.1} parent=11 // pred_region
          _
        $region16: #{seanet_resnet_block.1} parent=11 // pred_fallthru
          _
        // Predicated region
        $region17: #{seanet_resnet_block.1} parent=11 // pred_check
          %p184 = pneg %p96
        $region18: #{seanet_resnet_block.1} parent=11 // pred_check_branch
          %186 = sbr.rel (%p184) target = $region20
        $region19: #{seanet_resnet_block.1} parent=11 // pred_region
          _
        $region20: #{seanet_resnet_block.1} parent=11 // pred_fallthru
          _
        // Predicated region
        $region21: #{seanet_resnet_block.1} parent=11 // pred_check
          %p187 = pneg %p117
        $region22: #{seanet_resnet_block.1} parent=11 // pred_check_branch
          %189 = sbr.rel (%p187) target = $region24
        $region23: #{seanet_resnet_block.1} parent=11 // pred_region
          _
        $region24: #{seanet_resnet_block.1} parent=11 // pred_fallthru
          _
        // Predicated region
        $region25: #{seanet_resnet_block.1} parent=11 // pred_check
          %p190 = pneg %p138
        $region26: #{seanet_resnet_block.1} parent=11 // pred_check_branch
          %192 = sbr.rel (%p190) target = $region28
        $region27: #{seanet_resnet_block.1} parent=11 // pred_region
          _
        $region28: #{seanet_resnet_block.1} parent=11 // pred_fallthru
          _
      $region12: #{seanet_resnet_block.1} parent=5 // pred_fallthru
        _
      %p193 = scmp.lt.s32.totalorder %s14, 2
      // Predicated region
      $region29: #{seanet_resnet_block.1} parent=5 // pred_check
        %p194 = pneg %p193
      $region30: #{seanet_resnet_block.1} parent=5 // pred_check_branch
        %196 = sbr.rel (%p194) target = $region32
      $region31: #{seanet_resnet_block.1} parent=5 // pred_region
        // Predicated region
        $region33: #{seanet_resnet_block.1} parent=31 // pred_check
          %p197 = pneg %p48
        $region34: #{seanet_resnet_block.1} parent=31 // pred_check_branch
          %199 = sbr.rel (%p197) target = $region36
        $region35: #{seanet_resnet_block.1} parent=31 // pred_region
          %p200 = scmp.lt.s32.totalorder %s21, 1
          %s201 = scalar_select %p200, %s21, 1
          %p202 = scmp.lt.s32.totalorder %s22, 0
          %s203 = scalar_select %p202, %s22, 0
          %s204 = sadd.s32 %s203, %s201
          %s205 = smul.addr %s204, 8
          %s206 = scalar_lea.vmem %s0, %s205
        $region36: #{seanet_resnet_block.1} parent=31 // pred_fallthru
          _
      $region32: #{seanet_resnet_block.1} parent=5 // pred_fallthru
        _
      %p207 = scmp.le.s32.totalorder 1, %s14
      %p208 = scmp.lt.s32.totalorder %s14, 3
      %p209 = pnand %p207, %p208
      %p210 = pneg %p209
      // Predicated region
      $region37: #{seanet_resnet_block.1} parent=5 // pred_check
        _
      $region38: #{seanet_resnet_block.1} parent=5 // pred_check_branch
        %212 = sbr.rel (%p209) target = $region40
      $region39: #{seanet_resnet_block.1} parent=5 // pred_region
        %s213 = ssub.s32 %s14, 1
        %p214 = scmp.lt.s32.totalorder %s23, 1
        %s215 = scalar_select %p214, %s23, 1
        %p216 = scmp.lt.s32.totalorder %s24, 0
        %s217 = scalar_select %p216, %s24, 0
        %s218 = sadd.s32 %s217, %s215
        %s219 = smul.addr %s218, 8
        %s220 = scalar_lea.vmem %s0, %s219
        %p221 = pneg %p54
        %p222 = pneg %p51
        %p223 = pneg %p75
        %p224 = pneg %p72
        %p225 = pneg %p96
        %p226 = pneg %p93
        %p227 = pneg %p117
        %p228 = pneg %p114
        %p229 = pneg %p138
        %p230 = pneg %p135
        %p231 = pneg %p166
        %p232 = pneg %p163
        %s233 = sand.u32 %s153, 1
        %s234 = scalar_lea.sflag [#allocation3], %s233
        %s235 = sand.u32 %s153, 1
        %s236 = smul.addr %s235, 8
        %s237 = scalar_lea.vmem [#allocation2], %s236
        %p238 = scmp.lt.s32.totalorder %s23, 1
        %s239 = scalar_select %p238, %s23, 1
        %p240 = scmp.lt.s32.totalorder %s24, 0
        %s241 = scalar_select %p240, %s24, 0
        %s242 = sadd.s32 %s241, %s239
        %s243 = smul.addr %s242, 8
        %s244 = scalar_lea.vmem %s0, %s243
        %v245 = vld [vmem:[%s244] sm:$0xff]
        %vm246 = vcmp.gt.f32.partialorder %v245, 0.0
        %v247 = vmul.f32 %v245, 1.442695
        %v248 = vpow.pop %v247
        %v249 = vsub.f32 %v248, 1.0
        %v250 = vsel %vm246, %v245, %v249
        %252 = vrot.lane.b32.xlu0 %v250, 126
        %v253 = vpop.permute.xlu0 %252
        %255 = vrot.lane.b32.xlu0 %v250, 124
        %v256 = vpop.permute.xlu0 %255
        %v258 = vld [vmem:[%s1] sm:$0xf]
        %v259 = vld [vmem:[%s2] sm:$0xf]
        %261 = vset.pattern.permute.xlu0 0
        %262 = vperm.xlu0 %261, %v259
        %v263 = vpop.permute.xlu0 %262
        %vm265 = vcmask 195584
        %v267 = vsel %vm265, %v258, 0
        %269 = vmatprep.subr.mxu0 0.0
        %270 = vmatpush1.msra.mxu0 0.0
        %271 = vmatprep.subr.mxu0 0.0
        %272 = vmatpush1.msra.mxu0 0.0
        %273 = vmatprep.subr.mxu0 0.0
        %274 = vmatpush1.msra.mxu0 0.0
        %275 = vmatprep.subr.mxu0 0.0
        %276 = vmatpush1.msra.mxu0 0.0
        %277 = vmatprep.subr.mxu0 0.0
        %278 = vmatpush1.msra.mxu0 0.0
        %279 = vmatprep.subr.mxu0 0.0
        %280 = vmatpush1.msra.mxu0 0.0
        %281 = vmatprep.subr.mxu0 0.0
        %282 = vmatpush1.msra.mxu0 0.0
        %283 = vmatprep.subr.mxu0 0.0
        %284 = vmatpush1.msra.mxu0 0.0
        %285 = vmatprep.subr.mxu0 0.0
        %286 = vmatpush1.msra.mxu0 0.0
        %287 = vmatprep.subr.mxu0 0.0
        %288 = vmatpush1.msra.mxu0 0.0
        %289 = vmatprep.subr.mxu0 0.0
        %290 = vmatpush1.msra.mxu0 0.0
        %291 = vmatprep.subr.mxu0 0.0
        %292 = vmatpush1.msra.mxu0 0.0
        %293 = vmatprep.subr.mxu0 0.0
        %294 = vmatpush1.msra.mxu0 0.0
        %295 = vmatprep.subr.mxu0 0.0
        %296 = vmatpush1.msra.mxu0 %v256
        %297 = vmatprep.subr.mxu0 0.0
        %298 = vmatpush1.msra.mxu0 %v253
        %299 = vmatprep.subr.mxu0 0.0
        %300 = vmatpush1.msra.mxu0 %v250
        %301 = vmatprep.subr.mxu0 0.0
        %302 = vmatpush2.msra.mxu0 0.0
        %303 = vmatprep.subr.mxu0 0.0
        %304 = vmatpush2.msra.mxu0 0.0
        %305 = vmatprep.subr.mxu0 0.0
        %306 = vmatpush2.msra.mxu0 0.0
        %307 = vmatprep.subr.mxu0 0.0
        %308 = vmatpush2.msra.mxu0 0.0
        %309 = vmatprep.subr.mxu0 0.0
        %310 = vmatpush2.msra.mxu0 0.0
        %311 = vmatprep.subr.mxu0 0.0
        %312 = vmatpush2.msra.mxu0 0.0
        %313 = vmatprep.subr.mxu0 0.0
        %314 = vmatpush2.msra.mxu0 0.0
        %315 = vmatprep.subr.mxu0 0.0
        %316 = vmatpush2.msra.mxu0 0.0
        %317 = vmatprep.subr.mxu0 0.0
        %318 = vmatpush2.msra.mxu0 0.0
        %319 = vmatprep.subr.mxu0 0.0
        %320 = vmatpush2.msra.mxu0 0.0
        %321 = vmatprep.subr.mxu0 0.0
        %322 = vmatpush2.msra.mxu0 0.0
        %323 = vmatprep.subr.mxu0 0.0
        %324 = vmatpush2.msra.mxu0 0.0
        %325 = vmatprep.subr.mxu0 0.0
        %326 = vmatpush2.msra.mxu0 0.0
        %327 = vmatprep.subr.mxu0 0.0
        %328 = vmatpush2.msra.mxu0 0.0
        %329 = vmatprep.subr.mxu0 0.0
        %330 = vmatpush2.msra.mxu0 0.0
        %331 = vmatprep.subr.mxu0 0.0
        %332 = vmatpush2.msra.mxu0 0.0
        %333 = vmatprep.mubr.f32.mxu0 0.0
        %334 = vmatmul.mubr.f32.gmra.mxu0 %v267
        %v335 = vpop.f32.mrf.mxu0
        %v336 = vadd.f32 %v263, %v335
        %v337 = vpop.f32.mrf.mxu0
        %338 = vdwg.mxu0
        %vm339 = vcmp.gt.f32.partialorder %v336, 0.0
        %v340 = vmul.f32 %v336, 1.442695
        %v341 = vpow.pop %v340
        %v342 = vsub.f32 %v341, 1.0
        %v343 = vsel %vm339, %v336, %v342
        %v344 = vld [vmem:[%s3] sm:$0xff]
        %v345 = vld [vmem:[%s4] sm:$0xff]
        %347 = vset.pattern.permute.xlu0 0
        %348 = vperm.xlu0 %347, %v345
        %v349 = vpop.permute.xlu0 %348
        %vm351 = vcmask 31744
        %v353 = vsel %vm351, %v344, 0
        %vm355 = vcmask 1043456
        %v357 = vsel %vm355, %v343, 0
        %359 = vmatprep.subr.mxu0 0.0
        %360 = vmatpush1.msra.mxu0 0.0
        %361 = vmatprep.subr.mxu0 0.0
        %362 = vmatpush1.msra.mxu0 0.0
        %363 = vmatprep.subr.mxu0 0.0
        %364 = vmatpush1.msra.mxu0 0.0
        %365 = vmatprep.subr.mxu0 0.0
        %366 = vmatpush1.msra.mxu0 0.0
        %367 = vmatprep.subr.mxu0 0.0
        %368 = vmatpush1.msra.mxu0 0.0
        %369 = vmatprep.subr.mxu0 0.0
        %370 = vmatpush1.msra.mxu0 0.0
        %371 = vmatprep.subr.mxu0 0.0
        %372 = vmatpush1.msra.mxu0 0.0
        %373 = vmatprep.subr.mxu0 0.0
        %374 = vmatpush1.msra.mxu0 0.0
        %375 = vmatprep.subr.mxu0 0.0
        %376 = vmatpush1.msra.mxu0 0.0
        %377 = vmatprep.subr.mxu0 0.0
        %378 = vmatpush1.msra.mxu0 0.0
        %379 = vmatprep.subr.mxu0 0.0
        %380 = vmatpush1.msra.mxu0 0.0
        %381 = vmatprep.subr.mxu0 0.0
        %382 = vmatpush1.msra.mxu0 0.0
        %383 = vmatprep.subr.mxu0 0.0
        %384 = vmatpush1.msra.mxu0 0.0
        %385 = vmatprep.subr.mxu0 0.0
        %386 = vmatpush1.msra.mxu0 0.0
        %387 = vmatprep.subr.mxu0 0.0
        %388 = vmatpush1.msra.mxu0 0.0
        %389 = vmatprep.subr.mxu0 0.0
        %390 = vmatpush1.msra.mxu0 %v357
        %391 = vmatprep.subr.mxu0 0.0
        %392 = vmatpush2.msra.mxu0 0.0
        %393 = vmatprep.subr.mxu0 0.0
        %394 = vmatpush2.msra.mxu0 0.0
        %395 = vmatprep.subr.mxu0 0.0
        %396 = vmatpush2.msra.mxu0 0.0
        %397 = vmatprep.subr.mxu0 0.0
        %398 = vmatpush2.msra.mxu0 0.0
        %399 = vmatprep.subr.mxu0 0.0
        %400 = vmatpush2.msra.mxu0 0.0
        %401 = vmatprep.subr.mxu0 0.0
        %402 = vmatpush2.msra.mxu0 0.0
        %403 = vmatprep.subr.mxu0 0.0
        %404 = vmatpush2.msra.mxu0 0.0
        %405 = vmatprep.subr.mxu0 0.0
        %406 = vmatpush2.msra.mxu0 0.0
        %407 = vmatprep.subr.mxu0 0.0
        %408 = vmatpush2.msra.mxu0 0.0
        %409 = vmatprep.subr.mxu0 0.0
        %410 = vmatpush2.msra.mxu0 0.0
        %411 = vmatprep.subr.mxu0 0.0
        %412 = vmatpush2.msra.mxu0 0.0
        %413 = vmatprep.subr.mxu0 0.0
        %414 = vmatpush2.msra.mxu0 0.0
        %415 = vmatprep.subr.mxu0 0.0
        %416 = vmatpush2.msra.mxu0 0.0
        %417 = vmatprep.subr.mxu0 0.0
        %418 = vmatpush2.msra.mxu0 0.0
        %419 = vmatprep.subr.mxu0 0.0
        %420 = vmatpush2.msra.mxu0 0.0
        %421 = vmatprep.subr.mxu0 0.0
        %422 = vmatpush2.msra.mxu0 0.0
        %423 = vmatprep.mubr.f32.mxu0 0.0
        %424 = vmatmul.mubr.f32.gmra.mxu0 %v353
        %v425 = vpop.f32.mrf.mxu0
        %v426 = vadd.f32 %v349, %v425
        %v427 = vpop.f32.mrf.mxu0
        %428 = vdwg.mxu0
        %430 = vrot.lane.b32.xlu0 %v245, 126
        %v431 = vpop.permute.xlu0 %430
        %v433 = vadd.f32 %v426, %v431
        %vm434 = vcmask 130048
        %435 = vst.msk [vmem:[%s237] sm:$0xff] %vm434, %v433
        %s436 = sand.u32 %s153, 1
        %s437 = scalar_lea.sflag [#allocation3], %s436
        %s438 = sand.u32 %s153, 1
        %s439 = smul.addr %s438, 8
        %s440 = scalar_lea.vmem [#allocation2], %s439
        // Predicated region
        $region41: #{seanet_resnet_block.1} parent=39 // pred_check
          %p441 = pneg %p163
        $region42: #{seanet_resnet_block.1} parent=39 // pred_check_branch
          %443 = sbr.rel (%p441) target = $region44
        $region43: #{seanet_resnet_block.1} parent=39 // pred_region
          %s445 = ssub.s32 128, 128
          %446 = vsyncadd %s437, %s445
          %s447 = sadd.s32 %s24, %s23
          %s448 = smul.addr %s447, 128
          %s449 = scalar_lea.hbm %s5, %s448
          %s451 = sshll.u32 %s440, 4
          %s452 = int_to_ptr.vmem [resolvable:$true] %s451
          %454 = dma.vmem_to_hbm [thread:$0]  %s452, 128, %s449, %s437
        $region44: #{seanet_resnet_block.1} parent=39 // pred_fallthru
          _
      $region40: #{seanet_resnet_block.1} parent=5 // pred_fallthru
        _
      %p455 = scmp.le.s32.totalorder 2, %s14
      // Predicated region
      $region45: #{seanet_resnet_block.1} parent=5 // pred_check
        %p456 = pneg %p455
      $region46: #{seanet_resnet_block.1} parent=5 // pred_check_branch
        %458 = sbr.rel (%p456) target = $region48
      $region47: #{seanet_resnet_block.1} parent=5 // pred_region
        %s459 = ssub.s32 %s14, 2
        // Predicated region
        $region49: #{seanet_resnet_block.1} parent=47 // pred_check
          %p460 = pneg %p169
        $region50: #{seanet_resnet_block.1} parent=47 // pred_check_branch
          %462 = sbr.rel (%p460) target = $region52
        $region51: #{seanet_resnet_block.1} parent=47 // pred_region
          %s463 = sand.u32 %s154, 1
          %s464 = scalar_lea.sflag [#allocation3], %s463
          %s465 = sand.u32 %s154, 1
          %s466 = smul.addr %s465, 8
          %s467 = scalar_lea.vmem [#allocation2], %s466
          %468 = dma.done %s464, 128
        $region52: #{seanet_resnet_block.1} parent=47 // pred_fallthru
          _
      $region48: #{seanet_resnet_block.1} parent=5 // pred_fallthru
        _
    $region6: #{seanet_resnet_block.1} parent=1 // loop_footer
      %s18 = sadd.s32 1, %s14
    $region7: #{seanet_resnet_block.1} parent=1 // loop_footer_branch
      %13 = sbr.rel target = $region3
    $region8: #{seanet_resnet_block.1} parent=1 // loop_exit
      _
    %469 = vsyncpa [#allocation3], 1
    %s470 = scalar_lea.sflag [#allocation3], 1
    %471 = vsyncpa %s470, 1

</llo_original>
